<compile_context>
chip_gen: v7x
topology: tpu7x:2x2x1
jax: 0.10.0
libtpu: 0.0.40
codegen_flags: <defaults>
</compile_context>

<pallas_src>
import functools
import math

import numpy as np

import jax
import jax.numpy as jnp
from jax import lax
from jax.experimental import pallas as pl
from jax.experimental.pallas import tpu as pltpu


# ---------------------------------------------------------------------------
# Pallas kernels
# ---------------------------------------------------------------------------
def _embed_pe_kernel(e_ref, pe_ref, o_ref, *, scale):
    # out = embedding * sqrt(d_model) + positional_encoding
    o_ref[0] = (e_ref[0] * scale + pe_ref[...]).astype(o_ref.dtype)


def _linear_kernel(x_ref, wt_ref, b_ref, o_ref, *, activation=None):
    # y = x @ W^T + b (W^T pre-transposed at init), optional fused ReLU.
    y = jnp.dot(x_ref[...], wt_ref[...], preferred_element_type=jnp.float32)
    y = y + b_ref[...]
    if activation == "relu":
        y = jnp.maximum(y, 0.0)
    o_ref[...] = y.astype(o_ref.dtype)


def _proj_ln_res_kernel(h_ref, wt_ref, b_ref, g_ref, bta_ref, res_ref, o_ref, *, eps):
    # Fused: projection -> matchbox LayerNorm -> residual add.
    y = jnp.dot(h_ref[...], wt_ref[...], preferred_element_type=jnp.float32)
    y = y + b_ref[...]
    d = y.shape[-1]
    mean = jnp.mean(y, axis=-1, keepdims=True)
    c = y - mean
    # torch.Tensor.std default is unbiased -> divide by (D - 1); eps added to std.
    var = jnp.sum(c * c, axis=-1, keepdims=True) * (1.0 / (d - 1))
    ln = g_ref[...] * (c / (jnp.sqrt(var) + eps)) + bta_ref[...]
    o_ref[...] = (res_ref[...] + ln).astype(o_ref.dtype)


def _mha_kernel(q_ref, k_ref, v_ref, o_ref, *, n_heads):
    # One batch element per grid step, ALL heads handled inside (amortizes the
    # per-grid-step overhead).  Heads are contiguous feature blocks because the
    # interleaved matchbox split was folded into the projection weights, and the
    # 1/sqrt(d_key) scale was folded into Wq, so no scaling happens here.
    # TODO(synk): for long sequences, tile the key axis with an online-softmax
    # (flash) accumulator and set vmem_limit_bytes; unnecessary at T=8.
    q = q_ref[0].astype(jnp.float32)   # (T, D)
    k = k_ref[0].astype(jnp.float32)
    v = v_ref[0].astype(jnp.float32)
    d = q.shape[-1]
    hd = d // n_heads
    outs = []
    for h in range(n_heads):           # static unroll over heads
        sl = slice(h * hd, (h + 1) * hd)
        qh, kh, vh = q[:, sl], k[:, sl], v[:, sl]
        # Contract last dims directly (no materialized k.T).
        s = lax.dot_general(qh, kh, (((1,), (1,)), ((), ())),
                            preferred_element_type=jnp.float32)      # (T, T)
        s = s - jnp.max(s, axis=-1, keepdims=True)
        p = jnp.exp(s)
        inv = pl.reciprocal(jnp.sum(p, axis=-1, keepdims=True), approx=True)
        p = p * inv
        outs.append(jnp.dot(p, vh, preferred_element_type=jnp.float32))
    # Single lane-dense store of all heads at once.
    o_ref[0] = jnp.concatenate(outs, axis=-1).astype(o_ref.dtype)


# ---------------------------------------------------------------------------
# Pallas wrappers
# ---------------------------------------------------------------------------
def embed_scale_add_pe(emb, pe, scale):
    """emb: (B, T, D); pe: (T, D) -> (B, T, D)."""
    B, T, D = emb.shape
    kernel = functools.partial(_embed_pe_kernel, scale=float(scale))
    return pl.pallas_call(
        kernel,
        out_shape=jax.ShapeDtypeStruct((B, T, D), emb.dtype),
        grid=(B,),
        in_specs=[
            pl.BlockSpec((1, T, D), lambda b: (b, 0, 0)),
            pl.BlockSpec((T, D), lambda b: (0, 0)),
        ],
        out_specs=pl.BlockSpec((1, T, D), lambda b: (b, 0, 0)),
        compiler_params=pltpu.CompilerParams(dimension_semantics=("parallel",)),
    )(emb, pe)


def linear(x, wt, b2, *, activation=None, block_rows=256):
    """x: (N, Din); wt: (Din, Dout) pre-transposed; b2: (1, Dout) -> (N, Dout)."""
    N, Din = x.shape
    Dout = wt.shape[1]
    tm = N if N <= block_rows else block_rows
    kernel = functools.partial(_linear_kernel, activation=activation)
    return pl.pallas_call(
        kernel,
        out_shape=jax.ShapeDtypeStruct((N, Dout), x.dtype),
        grid=(pl.cdiv(N, tm),),
        in_specs=[
            pl.BlockSpec((tm, Din), lambda i: (i, 0)),
            pl.BlockSpec((Din, Dout), lambda i: (0, 0)),   # weights stay resident
            pl.BlockSpec((1, Dout), lambda i: (0, 0)),
        ],
        out_specs=pl.BlockSpec((tm, Dout), lambda i: (i, 0)),
        compiler_params=pltpu.CompilerParams(dimension_semantics=("parallel",)),
    )(x, wt, b2)


def proj_ln_residual(h, wt, b2, gamma2, beta2, residual, *, eps=1e-6, block_rows=256):
    """out = residual + LayerNorm(h @ wt + b2); shapes (N, Din)->(N, Dout)."""
    N, Din = h.shape
    Dout = wt.shape[1]
    tm = N if N <= block_rows else block_rows
    kernel = functools.partial(_proj_ln_res_kernel, eps=eps)
    return pl.pallas_call(
        kernel,
        out_shape=jax.ShapeDtypeStruct((N, Dout), h.dtype),
        grid=(pl.cdiv(N, tm),),
        in_specs=[
            pl.BlockSpec((tm, Din), lambda i: (i, 0)),
            pl.BlockSpec((Din, Dout), lambda i: (0, 0)),
            pl.BlockSpec((1, Dout), lambda i: (0, 0)),
            pl.BlockSpec((1, Dout), lambda i: (0, 0)),
            pl.BlockSpec((1, Dout), lambda i: (0, 0)),
            pl.BlockSpec((tm, Dout), lambda i: (i, 0)),
        ],
        out_specs=pl.BlockSpec((tm, Dout), lambda i: (i, 0)),
        compiler_params=pltpu.CompilerParams(dimension_semantics=("parallel",)),
    )(h, wt, b2, gamma2, beta2, residual)


def mha_attention(q, k, v, n_heads):
    """q, k, v: (B, T, D) with heads as contiguous feature blocks -> (B, T, D)."""
    B, T, D = q.shape
    kernel = functools.partial(_mha_kernel, n_heads=n_heads)
    return pl.pallas_call(
        kernel,
        out_shape=jax.ShapeDtypeStruct((B, T, D), q.dtype),
        grid=(B,),
        in_specs=[
            pl.BlockSpec((1, T, D), lambda b: (b, 0, 0)),
            pl.BlockSpec((1, T, D), lambda b: (b, 0, 0)),
            pl.BlockSpec((1, T, D), lambda b: (b, 0, 0)),
        ],
        out_specs=pl.BlockSpec((1, T, D), lambda b: (b, 0, 0)),
        compiler_params=pltpu.CompilerParams(dimension_semantics=("parallel",)),
    )(q, k, v)


# ---------------------------------------------------------------------------
# Trace-time parameter preparation (permutation / scale / fusion of weights)
# ---------------------------------------------------------------------------
def head_permutation(d_model, n_heads):
    # new feature index (h*hd + j)  <-  original interleaved index (j*H + h)
    hd = d_model // n_heads
    return np.arange(d_model).reshape(hd, n_heads).T.reshape(-1)


def prepare_layer(p, n_heads, d_model):
    D = d_model
    perm = head_permutation(D, n_heads)
    inv_scale = 1.0 / math.sqrt(D)               # matchbox Attention uses full d_model
    wq = p["wq"][perm, :] * inv_scale
    bq = p["bq"][perm] * inv_scale
    wk, bk = p["wk"][perm, :], p["bk"][perm]
    wv, bv = p["wv"][perm, :], p["bv"][perm]
    return dict(
        wqkv_t=jnp.concatenate([wq, wk, wv], axis=0).T,        # (D, 3D)
        bqkv=jnp.concatenate([bq, bk, bv]).reshape(1, 3 * D),
        wo_t=p["wo"][:, perm].T,                               # (D, D)
        bo=p["bo"].reshape(1, D),
        ln1_g=p["ln1_g"].reshape(1, D), ln1_b=p["ln1_b"].reshape(1, D),
        w1_t=p["w1"].T, b1=p["b1"].reshape(1, -1),
        w2_t=p["w2"].T, b2=p["b2"].reshape(1, D),
        ln2_g=p["ln2_g"].reshape(1, D), ln2_b=p["ln2_b"].reshape(1, D),
    )


# ---------------------------------------------------------------------------
# Encoder forward (Pallas path)
# ---------------------------------------------------------------------------
def positional_encodings(T, D, dtype=jnp.float32):
    positions = jnp.arange(T, dtype=jnp.float32)
    channels = jnp.arange(0, D, 2, dtype=jnp.float32) / D
    channels = 1.0 / (10000.0 ** channels)
    enc = positions[:, None] * channels[None, :]               # (T, D//2)
    enc = jnp.stack([jnp.sin(enc), jnp.cos(enc)], axis=-1).reshape(T, D)
    return enc.astype(dtype)


def encoder_layer_forward(x, lp, n_heads):
    B, T, D = x.shape
    xf = x.reshape(B * T, D)

    # --- self-attention residual block ---
    qkv = linear(xf, lp["wqkv_t"], lp["bqkv"])                 # (N, 3D), one fused call
    qkv3 = qkv.reshape(B, T, 3 * D)
    q = qkv3[..., 0 * D:1 * D]
    k = qkv3[..., 1 * D:2 * D]
    v = qkv3[..., 2 * D:3 * D]
    attn = mha_attention(q, k, v, n_heads)                     # (B, T, D) head-contiguous
    x1 = proj_ln_residual(attn.reshape(B * T, D), lp["wo_t"], lp["bo"],
                          lp["ln1_g"], lp["ln1_b"], xf)        # wo + LN + residual fused

    # --- feedforward residual block ---
    h = linear(x1, lp["w1_t"], lp["b1"], activation="relu")    # linear1 + ReLU fused
    x2 = proj_ln_residual(h, lp["w2_t"], lp["b2"],
                          lp["ln2_g"], lp["ln2_b"], x1)        # linear2 + LN + residual
    return x2.reshape(B, T, D)


def encoder_forward(token_ids, emb_weight, prepared_layers, n_heads, d_model):
    B, T = token_ids.shape
    # TODO(synk): embedding row gather uses jnp.take; a Pallas scalar-prefetch
    # DMA-gather kernel would avoid the XLA gather for large vocab sizes.
    emb = jnp.take(emb_weight, token_ids, axis=0)              # (B, T, D)
    pe = positional_encodings(T, d_model, emb.dtype)
    x = embed_scale_add_pe(emb, pe, math.sqrt(d_model))        # scale + PE fused
    # Dropout layers are identity at inference.
    encodings = []
    for lp in prepared_layers:
        x = encoder_layer_forward(x, lp, n_heads)
        encodings.append(x)
    return encodings


# ---------------------------------------------------------------------------
# Pure-JAX reference (faithful to the PyTorch module, unpermuted weights)
# ---------------------------------------------------------------------------
def encoder_reference(token_ids, emb_weight, raw_layers, n_heads, d_model, eps=1e-6):
    B, T = token_ids.shape
    D, H = d_model, n_heads
    hd = D // H

    def lin(z, w, b):
        return jnp.einsum("btd,od->bto", z, w) + b

    def layer_norm(y, g, bta):
        mean = jnp.mean(y, axis=-1, keepdims=True)
        var = jnp.sum((y - mean) ** 2, axis=-1, keepdims=True) / (y.shape[-1] - 1)
        return g * (y - mean) / (jnp.sqrt(var) + eps) + bta

    def to_heads(z):   # matchbox split_dim(-1, H).join_dims(0, -1): interleaved
        return (z.reshape(B, T, hd, H).transpose(0, 3, 1, 2).reshape(B * H, T, hd))

    x = emb_weight[token_ids] * math.sqrt(D)
    x = x + positional_encodings(T, D)

    outs = []
    for p in raw_layers:
        q = lin(x, p["wq"], p["bq"])
        k = lin(x, p["wk"], p["bk"])
        v = lin(x, p["wv"], p["bv"])
        qh, kh, vh = to_heads(q), to_heads(k), to_heads(v)
        s = jnp.einsum("bqd,bkd->bqk", qh, kh) / math.sqrt(D)
        pr = jax.nn.softmax(s, axis=-1)
        oh = jnp.einsum("bqk,bkd->bqd", pr, vh)
        o = oh.reshape(B, H, T, hd).transpose(0, 2, 3, 1).reshape(B, T, D)
        mh = lin(o, p["wo"], p["bo"])
        x = x + layer_norm(mh, p["ln1_g"], p["ln1_b"])
        ff = lin(jax.nn.relu(lin(x, p["w1"], p["b1"])), p["w2"], p["b2"])
        x = x + layer_norm(ff, p["ln2_g"], p["ln2_b"])
        outs.append(x)
    return outs


# ---------------------------------------------------------------------------
if __name__ == "__main__":
    B, T = 2, 8
    d_model, d_hidden, n_heads, n_layers = 32, 64, 4, 2
    vocab = 50

    root = jax.random.PRNGKey(0)
    keys = jax.random.split(root, 2 + n_layers)
    token_ids = jax.random.randint(keys[0], (B, T), 0, vocab)
    emb_weight = jax.random.normal(keys[1], (vocab, d_model), jnp.float32) * 0.1

    def linear_params(key, d_out, d_in):
        kw, kb = jax.random.split(key)
        bound = 1.0 / math.sqrt(d_in)
        w = jax.random.uniform(kw, (d_out, d_in), jnp.float32, -bound, bound)
        b = jax.random.uniform(kb, (d_out,), jnp.float32, -bound, bound)
        return w, b

    raw_layers = []
    for li in range(n_layers):
        ks = jax.random.split(keys[2 + li], 6)
        wq, bq = linear_params(ks[0], d_model, d_model)
        wk, bk = linear_params(ks[1], d_model, d_model)
        wv, bv = linear_params(ks[2], d_model, d_model)
        wo, bo = linear_params(ks[3], d_model, d_model)
        w1, b1 = linear_params(ks[4], d_hidden, d_model)
        w2, b2 = linear_params(ks[5], d_model, d_hidden)
        raw_layers.append(dict(
            wq=wq, bq=bq, wk=wk, bk=bk, wv=wv, bv=bv, wo=wo, bo=bo,
            w1=w1, b1=b1, w2=w2, b2=b2,
            ln1_g=jnp.ones(d_model, jnp.float32), ln1_b=jnp.zeros(d_model, jnp.float32),
            ln2_g=jnp.ones(d_model, jnp.float32), ln2_b=jnp.zeros(d_model, jnp.float32)))

    prepared = [prepare_layer(p, n_heads, d_model) for p in raw_layers]

    outs = encoder_forward(token_ids, emb_weight, prepared, n_heads, d_model)
    outs = jax.block_until_ready(outs)

    refs = encoder_reference(token_ids, emb_weight, raw_layers, n_heads, d_model)

    assert len(outs) == n_layers
    # Tolerance accounts for pl.reciprocal(approx=True) in the softmax normalization.
    for o, r in zip(outs, refs):
        assert o.shape == (B, T, d_model)
        assert jnp.allclose(o, r, atol=2e-2, rtol=2e-2), float(jnp.max(jnp.abs(o - r)))

    print("KERNEL_OK")
</pallas_src>

<mosaic_0001>
module attributes {stable_mosaic.version = 11 : i64} {
  func.func @_embed_pe_kernel(%arg0: i32, %arg1: memref<1x8x32xf32, #tpu.memory_space<vmem>>, %arg2: memref<8x32xf32, #tpu.memory_space<vmem>>, %arg3: memref<1x8x32xf32, #tpu.memory_space<vmem>>) attributes {dimension_semantics = [#tpu.dimension_semantics<parallel>], iteration_bounds = array<i64: 2>, scalar_prefetch = 0 : i64, scratch_operands = 0 : i64, tpu.core_type = #tpu.core_type<tc>, window_params = [{transform_indices = @transform_0, window_bounds = array<i64: 1, 8, 32>}, {pipeline_mode = #tpu.pipeline_mode<synchronous>, transform_indices = @transform_1, window_bounds = array<i64: 8, 32>}, {transform_indices = @transform_2, window_bounds = array<i64: 1, 8, 32>}]} {
    %c0 = arith.constant 0 : index
    %c0_0 = arith.constant 0 : index
    %c0_1 = arith.constant 0 : index
    %0 = vector.load %arg1[%c0, %c0_0, %c0_1] : memref<1x8x32xf32, #tpu.memory_space<vmem>>, vector<1x8x32xf32>
    %1 = vector.shape_cast %0 : vector<1x8x32xf32> to vector<8x32xf32>
    %cst = arith.constant 5.65685415 : f32
    %2 = vector.broadcast %cst : f32 to vector<8x32xf32>
    %3 = arith.mulf %1, %2 : vector<8x32xf32>
    %c0_2 = arith.constant 0 : index
    %c0_3 = arith.constant 0 : index
    %4 = vector.load %arg2[%c0_2, %c0_3] : memref<8x32xf32, #tpu.memory_space<vmem>>, vector<8x32xf32>
    %5 = arith.addf %3, %4 : vector<8x32xf32>
    %c0_4 = arith.constant 0 : index
    %c0_5 = arith.constant 0 : index
    %c0_6 = arith.constant 0 : index
    %6 = vector.load %arg3[%c0_4, %c0_5, %c0_6] : memref<1x8x32xf32, #tpu.memory_space<vmem>>, vector<1x8x32xf32>
    %7 = vector.shape_cast %6 : vector<1x8x32xf32> to vector<8x32xf32>
    %8 = vector.shape_cast %5 : vector<8x32xf32> to vector<1x8x32xf32>
    tpu.vector_store %arg3[%c0_4, %c0_5, %c0_6], %8 {strides = array<i32>} : memref<1x8x32xf32, #tpu.memory_space<vmem>>, vector<1x8x32xf32>,
    return
  }
  func.func @transform_0(%arg0: i32) -> (i32, i32, i32) {
    %c0_i32 = arith.constant 0 : i32
    %c0_i32_0 = arith.constant 0 : i32
    %c0_i32_1 = arith.constant 0 : i32
    return %arg0, %c0_i32, %c0_i32_0 : i32, i32, i32
  }
  func.func @transform_1(%arg0: i32) -> (i32, i32) {
    %c0_i32 = arith.constant 0 : i32
    %c0_i32_0 = arith.constant 0 : i32
    %c0_i32_1 = arith.constant 0 : i32
    return %c0_i32, %c0_i32_0 : i32, i32
  }
  func.func @transform_2(%arg0: i32) -> (i32, i32, i32) {
    %c0_i32 = arith.constant 0 : i32
    %c0_i32_0 = arith.constant 0 : i32
    %c0_i32_1 = arith.constant 0 : i32
    return %arg0, %c0_i32, %c0_i32_0 : i32, i32, i32
  }
}

</mosaic_0001>

<llo_original>
// kernel: tpu_custom_call.1
$region0: #{tpu_custom_call.1}
  #allocation0 [shape = 'u32[]', space=smem, size = 0x4, offset = 0x4, fixed_abs, tag = 'smem constant byte address 0x4 - core index']
  #allocation1 [shape = 'u32[144,128]{1,0:T(1,128)}', space=vmem, size = 0x12000, scoped, tag = 'internal scratch']
  %s0 = inlined_call_operand.hbm [shape: f32[2,8,32], index: 0, kind: input, shape index: {}]
  %s1 = inlined_call_operand.hbm [shape: f32[8,32], index: 1, kind: input, shape index: {}]
  %s2 = inlined_call_operand.hbm [shape: f32[2,8,32], index: 2, kind: output, shape index: {}]
  %s3 = sld [smem:[#allocation0]]
  $region49: #{tpu_custom_call.1} parent=0
    _
  %s5 = ssub.s32 1, %s3
  %s6 = scalar_select 0, %s5, %s3
  $region1: #{tpu_custom_call.1} parent=0
    #allocation2 [shape = 'u8[8192]{0}', space=vmem, size = 0x2000, scoped, tag = 'input window, operand 0']
    #allocation3 [shape = 's32[2]{0}', space=sflag, size = 0x8, scoped, tag = 'scoped memory for tpu_custom_call.1']
    #allocation4 [shape = 's32[2]{0}', space=sflag, size = 0x8, scoped, tag = 'scoped memory for tpu_custom_call.1']
    #allocation5 [shape = 'u8[4096]{0}', space=vmem, size = 0x1000, scoped, tag = 'input window, operand 1, single buffered']
    #allocation6 [shape = 's32[1]{0}', space=sflag, size = 0x4, scoped, tag = 'scoped memory for tpu_custom_call.1']
    #allocation7 [shape = 'u8[8192]{0}', space=vmem, size = 0x2000, scoped, tag = 'output window, operand 0']
    %7 = vsyncpa [#allocation3], 0
    %s8 = scalar_lea.sflag [#allocation3], 1
    %9 = vsyncpa %s8, 0
    %10 = vsyncpa [#allocation6], 0
    %11 = vsyncpa [#allocation4], 0
    %s12 = scalar_lea.sflag [#allocation4], 1
    %13 = vsyncpa %s12, 0
    loop: start=0, step=1, limit=4
    $region2: #{tpu_custom_call.1} parent=1 // loop_pre_header
      _
    $region3: #{tpu_custom_call.1} parent=1 // loop_header
      %s15 = sphi 0, %s19
      %p16 = scmp.ge.s32.totalorder %s15, 4
      %s25 = sphi 0, %s27
      %s28 = sphi 0, %s25
      %s29 = sphi 0, %s28
      %s45 = sphi 0, %s29
      %s49 = sphi 0, %s49
      %s51 = sphi 0, %s49
      %s52 = sphi 0, %s51
      %s66 = sphi 0, %s52
      %s72 = sphi 0, %s74
      %s75 = sphi 0, %s72
      %s76 = sphi 0, %s75
      %s92 = sphi 0, %s76
    $region4: #{tpu_custom_call.1} parent=1 // loop_header_branch
      %18 = sbr.rel (%p16) target = $region8
    $region5: #{tpu_custom_call.1} parent=1 // loop_body
      %s20 = ssub.s32 %s15, 1
      %s21 = ssub.s32 %s15, 2
      %s22 = sadd.s32 %s15, 1
      %s23 = ssub.s32 %s15, %s22
      %p24 = scmp.eq.s32.totalorder %s23, 0
      %s26 = sadd.s32 %s25, 1
      %s27 = scalar_select %p24, %s25, %s26
      %p30 = pneg %p24
      %p31 = scmp.eq.s32.totalorder %s15, 1
      %p32 = por %p30, %p31
      %p33 = scmp.ne.s32.totalorder %s25, %s28
      %p34 = scmp.eq.s32.totalorder %s15, 0
      %p35 = por %p33, %p34
      %p36 = scmp.ne.s32.totalorder %s25, %s28
      %p37 = scmp.eq.s32.totalorder %s20, 1
      %p38 = por %p36, %p37
      %p39 = scmp.ne.s32.totalorder %s28, %s29
      %p40 = scmp.eq.s32.totalorder %s20, 0
      %p41 = por %p39, %p40
      %p42 = scmp.ne.s32.totalorder %s28, %s29
      %p43 = scmp.eq.s32.totalorder %s21, 1
      %p44 = por %p42, %p43
      %p46 = scmp.ne.s32.totalorder %s29, %s45
      %p47 = scmp.eq.s32.totalorder %s21, 0
      %p48 = por %p46, %p47
      %s50 = sadd.s32 %s49, 1
      %p53 = scmp.eq.s32.totalorder %s15, 1
      %p54 = scmp.ne.s32.totalorder %s49, %s51
      %p55 = scmp.eq.s32.totalorder %s15, 0
      %p56 = por %p54, %p55
      %p57 = scmp.ne.s32.totalorder %s49, %s51
      %p58 = scmp.eq.s32.totalorder %s20, 1
      %p59 = por %p57, %p58
      %p60 = scmp.ne.s32.totalorder %s51, %s52
      %p61 = scmp.eq.s32.totalorder %s20, 0
      %p62 = por %p60, %p61
      %p63 = scmp.ne.s32.totalorder %s51, %s52
      %p64 = scmp.eq.s32.totalorder %s21, 1
      %p65 = por %p63, %p64
      %p67 = scmp.ne.s32.totalorder %s52, %s66
      %p68 = scmp.eq.s32.totalorder %s21, 0
      %p69 = por %p67, %p68
      %s70 = ssub.s32 %s15, %s22
      %p71 = scmp.eq.s32.totalorder %s70, 0
      %s73 = sadd.s32 %s72, 1
      %s74 = scalar_select %p71, %s72, %s73
      %p77 = pneg %p71
      %p78 = scmp.eq.s32.totalorder %s15, 1
      %p79 = por %p77, %p78
      %p80 = scmp.ne.s32.totalorder %s72, %s75
      %p81 = scmp.eq.s32.totalorder %s15, 0
      %p82 = por %p80, %p81
      %p83 = scmp.ne.s32.totalorder %s72, %s75
      %p84 = scmp.eq.s32.totalorder %s20, 1
      %p85 = por %p83, %p84
      %p86 = scmp.ne.s32.totalorder %s75, %s76
      %p87 = scmp.eq.s32.totalorder %s20, 0
      %p88 = por %p86, %p87
      %p89 = scmp.ne.s32.totalorder %s75, %s76
      %p90 = scmp.eq.s32.totalorder %s21, 1
      %p91 = por %p89, %p90
      %p93 = scmp.ne.s32.totalorder %s76, %s92
      %p94 = scmp.eq.s32.totalorder %s21, 0
      %p95 = por %p93, %p94
      %p96 = scmp.le.s32.totalorder 1, %s15
      %p97 = scmp.lt.s32.totalorder %s15, 3
      %p98 = pnand %p96, %p97
      %p99 = pneg %p98
      // Predicated region
      $region9: #{tpu_custom_call.1} parent=5 // pred_check
        _
      $region10: #{tpu_custom_call.1} parent=5 // pred_check_branch
        %101 = sbr.rel (%p98) target = $region12
      $region11: #{tpu_custom_call.1} parent=5 // pred_region
        %s102 = ssub.s32 %s15, 1
        // Predicated region
        $region13: #{tpu_custom_call.1} parent=11 // pred_check
          %p103 = pneg %p62
        $region14: #{tpu_custom_call.1} parent=11 // pred_check_branch
          %105 = sbr.rel (%p103) target = $region16
        $region15: #{tpu_custom_call.1} parent=11 // pred_region
          %s107 = ssub.s32 128, 128
          %108 = vsyncadd [#allocation6], %s107
          %s110 = sshll.u32 [#allocation5], 4
          %s111 = int_to_ptr.vmem [resolvable:$true] %s110
          %113 = dma.hbm_to_vmem [thread:$0]  %s1, 128, %s111, [#allocation6]
        $region16: #{tpu_custom_call.1} parent=11 // pred_fallthru
          _
      $region12: #{tpu_custom_call.1} parent=5 // pred_fallthru
        _
      %p114 = scmp.lt.s32.totalorder %s15, 2
      // Predicated region
      $region17: #{tpu_custom_call.1} parent=5 // pred_check
        %p115 = pneg %p114
      $region18: #{tpu_custom_call.1} parent=5 // pred_check_branch
        %117 = sbr.rel (%p115) target = $region20
      $region19: #{tpu_custom_call.1} parent=5 // pred_region
        // Predicated region
        $region21: #{tpu_custom_call.1} parent=19 // pred_check
          %p118 = pneg %p35
        $region22: #{tpu_custom_call.1} parent=19 // pred_check_branch
          %120 = sbr.rel (%p118) target = $region24
        $region23: #{tpu_custom_call.1} parent=19 // pred_region
          %s121 = sand.u32 %s25, 1
          %s122 = scalar_lea.sflag [#allocation3], %s121
          %s123 = sand.u32 %s25, 1
          %s124 = smul.addr %s123, 8
          %s125 = scalar_lea.vmem [#allocation2], %s124
          %s127 = ssub.s32 128, 128
          %128 = vsyncadd %s122, %s127
          %s129 = smul.addr %s15, 128
          %s130 = scalar_lea.hbm %s0, %s129
          %s132 = sshll.u32 %s125, 4
          %s133 = int_to_ptr.vmem [resolvable:$true] %s132
          %135 = dma.hbm_to_vmem [thread:$0]  %s130, 128, %s133, %s122
        $region24: #{tpu_custom_call.1} parent=19 // pred_fallthru
          _
      $region20: #{tpu_custom_call.1} parent=5 // pred_fallthru
        _
      %p136 = scmp.le.s32.totalorder 1, %s15
      %p137 = scmp.lt.s32.totalorder %s15, 3
      %p138 = pnand %p136, %p137
      %p139 = pneg %p138
      // Predicated region
      $region25: #{tpu_custom_call.1} parent=5 // pred_check
        _
      $region26: #{tpu_custom_call.1} parent=5 // pred_check_branch
        %141 = sbr.rel (%p138) target = $region28
      $region27: #{tpu_custom_call.1} parent=5 // pred_region
        %s142 = ssub.s32 %s15, 1
        %s143 = sand.u32 %s28, 1
        %s144 = scalar_lea.sflag [#allocation3], %s143
        %s145 = sand.u32 %s28, 1
        %s146 = smul.addr %s145, 8
        %s147 = scalar_lea.vmem [#allocation2], %s146
        // Predicated region
        $region29: #{tpu_custom_call.1} parent=27 // pred_check
          %p148 = pneg %p41
        $region30: #{tpu_custom_call.1} parent=27 // pred_check_branch
          %150 = sbr.rel (%p148) target = $region32
        $region31: #{tpu_custom_call.1} parent=27 // pred_region
          %151 = dma.done %s144, 128
        $region32: #{tpu_custom_call.1} parent=27 // pred_fallthru
          _
        // Predicated region
        $region33: #{tpu_custom_call.1} parent=27 // pred_check
          %p152 = pneg %p62
        $region34: #{tpu_custom_call.1} parent=27 // pred_check_branch
          %154 = sbr.rel (%p152) target = $region36
        $region35: #{tpu_custom_call.1} parent=27 // pred_region
          %155 = dma.done [#allocation6], 128
        $region36: #{tpu_custom_call.1} parent=27 // pred_fallthru
          _
        %s156 = sand.u32 %s28, 1
        %s157 = scalar_lea.sflag [#allocation3], %s156
        %s158 = sand.u32 %s28, 1
        %s159 = smul.addr %s158, 8
        %s160 = scalar_lea.vmem [#allocation2], %s159
        %p161 = pneg %p41
        %p162 = pneg %p38
        %p163 = pneg %p62
        %p164 = pneg %p59
        %p165 = pneg %p88
        %p166 = pneg %p85
        %s167 = sand.u32 %s75, 1
        %s168 = scalar_lea.sflag [#allocation4], %s167
        %s169 = sand.u32 %s75, 1
        %s170 = smul.addr %s169, 8
        %s171 = scalar_lea.vmem [#allocation7], %s170
        %v172 = vld [vmem:[%s147] sm:$0xff]
        %v173 = vmul.f32 %v172, 5.656854
        %v174 = vld [vmem:[#allocation5] sm:$0xff]
        %v175 = vadd.f32 %v173, %v174
        %vm176 = vcmask 261120
        %177 = vst.msk [vmem:[%s171] sm:$0xff] %vm176, %v175
        %s178 = sand.u32 %s75, 1
        %s179 = scalar_lea.sflag [#allocation4], %s178
        %s180 = sand.u32 %s75, 1
        %s181 = smul.addr %s180, 8
        %s182 = scalar_lea.vmem [#allocation7], %s181
        // Predicated region
        $region37: #{tpu_custom_call.1} parent=27 // pred_check
          %p183 = pneg %p85
        $region38: #{tpu_custom_call.1} parent=27 // pred_check_branch
          %185 = sbr.rel (%p183) target = $region40
        $region39: #{tpu_custom_call.1} parent=27 // pred_region
          %s187 = ssub.s32 128, 128
          %188 = vsyncadd %s179, %s187
          %s189 = smul.addr %s20, 128
          %s190 = scalar_lea.hbm %s2, %s189
          %s192 = sshll.u32 %s182, 4
          %s193 = int_to_ptr.vmem [resolvable:$true] %s192
          %195 = dma.vmem_to_hbm [thread:$0]  %s193, 128, %s190, %s179
        $region40: #{tpu_custom_call.1} parent=27 // pred_fallthru
          _
      $region28: #{tpu_custom_call.1} parent=5 // pred_fallthru
        _
      %p196 = scmp.le.s32.totalorder 2, %s15
      // Predicated region
      $region41: #{tpu_custom_call.1} parent=5 // pred_check
        %p197 = pneg %p196
      $region42: #{tpu_custom_call.1} parent=5 // pred_check_branch
        %199 = sbr.rel (%p197) target = $region44
      $region43: #{tpu_custom_call.1} parent=5 // pred_region
        %s200 = ssub.s32 %s15, 2
        // Predicated region
        $region45: #{tpu_custom_call.1} parent=43 // pred_check
          %p201 = pneg %p91
        $region46: #{tpu_custom_call.1} parent=43 // pred_check_branch
          %203 = sbr.rel (%p201) target = $region48
        $region47: #{tpu_custom_call.1} parent=43 // pred_region
          %s204 = sand.u32 %s76, 1
          %s205 = scalar_lea.sflag [#allocation4], %s204
          %s206 = sand.u32 %s76, 1
          %s207 = smul.addr %s206, 8
          %s208 = scalar_lea.vmem [#allocation7], %s207
          %209 = dma.done %s205, 128
        $region48: #{tpu_custom_call.1} parent=43 // pred_fallthru
          _
      $region44: #{tpu_custom_call.1} parent=5 // pred_fallthru
        _
    $region6: #{tpu_custom_call.1} parent=1 // loop_footer
      %s19 = sadd.s32 1, %s15
    $region7: #{tpu_custom_call.1} parent=1 // loop_footer_branch
      %14 = sbr.rel target = $region3
    $region8: #{tpu_custom_call.1} parent=1 // loop_exit
      _
    %210 = vsyncpa [#allocation3], 1
    %s211 = scalar_lea.sflag [#allocation3], 1
    %212 = vsyncpa %s211, 1
    %213 = vsyncpa [#allocation6], 1
    %214 = vsyncpa [#allocation4], 1
    %s215 = scalar_lea.sflag [#allocation4], 1
    %216 = vsyncpa %s215, 1

</llo_original>
